<compile_context>
chip_gen: v6e
topology: v6e:2x2x1
jax: 0.10.0
libtpu: 0.0.40
codegen_flags: <defaults>
</compile_context>

<pallas_src>
import functools

import jax
import jax.numpy as jnp
from jax.experimental import pallas as pl
from jax.experimental.pallas import tpu as pltpu

# ---------------------------------------------------------------------------
# Config (mirrors the PyTorch module's __init__ arguments)
# ---------------------------------------------------------------------------
CONFIG = {
    "views_dims": [8, 8],     # sum -> 16 input features
    "hidden_dims": [32, 32],
    "output_dim": 8,
    "batch_norm": True,
    "dropout": 0.1,           # inference -> identity
    "activation": "relu",
}
BN_EPS = 1e-5
LANE = 128                    # lane-dense feature padding for hidden/output dims
TB_MAX = 2048                 # max batch tile (sized with huge margin vs v7x 64 MiB VMEM)


def _activation(x, name):
    if name == "relu":
        return jnp.maximum(x, 0.0)
    if name == "tanh":
        return jnp.tanh(x)
    if name == "sigmoid":
        return 1.0 / (1.0 + jnp.exp(-x))
    return x


def _round_up(n, m):
    return ((n + m - 1) // m) * m


def _choose_tb(b8):
    """Adaptive batch tile: no waste for small batches, >=2 grid steps for big ones."""
    if b8 <= 512:
        return b8                                     # one tile sized to the real batch
    # Large batch: cap at TB_MAX and guarantee >= 2 grid steps (v7x has 2 TensorCores).
    return min(TB_MAX, _round_up((b8 + 1) // 2, 8))


# ---------------------------------------------------------------------------
# Kernel: whole (BN-folded) MLP on one (TB, *) batch tile.
#   x_ref : (TB, in_pad)        bf16
#   w0_ref: (in_pad, F)         bf16   first layer (natural K, lane-dense N)
#   wr_ref: (n_rest, F, F)      bf16   remaining layers (VMEM-resident)
#   b_ref : (n_rest + 1, F)     f32    all biases (BN folded in)
#   o_ref : (TB, F)             bf16   lane-dense store
# ---------------------------------------------------------------------------
def make_mlp_kernel(n_rest, activation):
    def mlp_kernel(x_ref, w0_ref, wr_ref, b_ref, o_ref):
        b_all = b_ref[...]                              # tiny, loaded once
        h = x_ref[...]                                  # bf16 activations
        # First hidden layer (always a hidden layer: BN folded, dropout = identity).
        z = jnp.dot(h, w0_ref[...], preferred_element_type=jnp.float32)  # MXU, f32 acc
        z = z + b_all[0:1, :]
        z = _activation(z, activation)
        h = z.astype(jnp.bfloat16)
        # Remaining hidden layers + final Linear.
        for l in range(n_rest):
            z = jnp.dot(h, wr_ref[l], preferred_element_type=jnp.float32)
            z = z + b_all[l + 1:l + 2, :]
            if l < n_rest - 1:
                z = _activation(z, activation)
                h = z.astype(jnp.bfloat16)
            else:
                o_ref[...] = z.astype(o_ref.dtype)      # bf16 lane-dense store
    return mlp_kernel


# ---------------------------------------------------------------------------
# Parameter folding + packing (prep step — run ONCE per weight update and cached)
# ---------------------------------------------------------------------------
def fold_and_pack_params(params):
    assert len(params) >= 2, "expect at least one hidden layer + final Linear"
    folded = []
    for layer in params[:-1]:
        w, b, gamma, beta, mean, var = layer
        if CONFIG["batch_norm"]:
            scale = gamma * jax.lax.rsqrt(var + BN_EPS)            # (1, d_out)
            w_f = w * scale
            b_f = (b - mean) * scale + beta
        else:
            w_f, b_f = w, b
        folded.append((w_f, b_f))
    folded.append(params[-1])                                      # final Linear as-is

    in_dim = folded[0][0].shape[0]
    in_pad = _round_up(in_dim, 8)                                  # sublane alignment only
    out_dims = [w.shape[1] for w, _ in folded]
    f_pad = _round_up(max(out_dims), LANE)                         # lane-dense hidden/out

    w0 = jnp.pad(folded[0][0],
                 ((0, in_pad - in_dim), (0, f_pad - out_dims[0]))).astype(jnp.bfloat16)
    w_rest = jnp.stack(
        [jnp.pad(w, ((0, f_pad - w.shape[0]), (0, f_pad - w.shape[1])))
         for w, _ in folded[1:]]
    ).astype(jnp.bfloat16)
    b_stack = jnp.stack(
        [jnp.pad(b.reshape(-1), (0, f_pad - b.shape[-1])) for _, b in folded]
    ).astype(jnp.float32)
    return w0, w_rest, b_stack


# ---------------------------------------------------------------------------
# Steady-state forward (jitted; packed weights are passed in, never rebuilt here)
# ---------------------------------------------------------------------------
@jax.jit
def mlp_forward(x, w0, w_rest, b_stack):
    batch, in_dim = x.shape
    in_pad, f_pad = w0.shape
    n_rest = w_rest.shape[0]

    b8 = _round_up(max(batch, 1), 8)
    tb = _choose_tb(b8)
    b_pad = _round_up(b8, tb)

    x_p = x.astype(jnp.bfloat16)
    if b_pad != batch or in_pad != in_dim:
        x_p = jnp.pad(x_p, ((0, b_pad - batch), (0, in_pad - in_dim)))

    kernel = make_mlp_kernel(n_rest, CONFIG["activation"])
    out = pl.pallas_call(
        kernel,
        out_shape=jax.ShapeDtypeStruct((b_pad, f_pad), jnp.bfloat16),
        grid=(b_pad // tb,),
        in_specs=[
            pl.BlockSpec((tb, in_pad), lambda i: (i, 0)),                 # batch tile (pipelined)
            pl.BlockSpec((in_pad, f_pad), lambda i: (0, 0)),              # resident first-layer W
            pl.BlockSpec((n_rest, f_pad, f_pad), lambda i: (0, 0, 0)),    # resident remaining Ws
            pl.BlockSpec((n_rest + 1, f_pad), lambda i: (0, 0)),          # resident biases
        ],
        out_specs=pl.BlockSpec((tb, f_pad), lambda i: (i, 0)),
        compiler_params=pltpu.CompilerParams(
            dimension_semantics=("parallel",),
            vmem_limit_bytes=32 * 1024 * 1024,
        ),
    )(x_p, w0, w_rest, b_stack)
    return out                                                            # (b_pad, f_pad) bf16


def base_network_forward(x, packed):
    """Matches BaseNetwork.forward(v) -> (batch, output_dim) f32.

    Downstream consumers that can work on the padded bf16 block should use mlp_forward
    directly and fold the slice into their own op to avoid an extra HBM round-trip.
    """
    w0, w_rest, b_stack = packed
    out = mlp_forward(x, w0, w_rest, b_stack)
    return out[:x.shape[0], :CONFIG["output_dim"]].astype(jnp.float32)


# ---------------------------------------------------------------------------
# Deterministic parameter construction (synthetic — mirrors nn.Linear / BatchNorm1d shapes)
# ---------------------------------------------------------------------------
def init_params(key):
    in_dim = sum(CONFIG["views_dims"])
    dims = [in_dim] + list(CONFIG["hidden_dims"])
    params = []

    for i in range(len(CONFIG["hidden_dims"])):
        d_in, d_out = dims[i], dims[i + 1]
        key, kw, kb = jax.random.split(key, 3)
        bound = 1.0 / (d_in ** 0.5)
        w = jax.random.uniform(kw, (d_in, d_out), jnp.float32, -bound, bound)
        b = jax.random.uniform(kb, (1, d_out), jnp.float32, -bound, bound)
        gamma = jnp.ones((1, d_out), jnp.float32)
        beta = jnp.zeros((1, d_out), jnp.float32)
        mean = jnp.zeros((1, d_out), jnp.float32)
        var = jnp.ones((1, d_out), jnp.float32)
        params.append((w, b, gamma, beta, mean, var))

    d_in, d_out = dims[-1], CONFIG["output_dim"]
    key, kw, kb = jax.random.split(key, 3)
    bound = 1.0 / (d_in ** 0.5)
    w = jax.random.uniform(kw, (d_in, d_out), jnp.float32, -bound, bound)
    b = jax.random.uniform(kb, (1, d_out), jnp.float32, -bound, bound)
    params.append((w, b))

    return params


# ---------------------------------------------------------------------------
# Pure-JAX reference (exact f32, unfolded BN) for a sanity check
# ---------------------------------------------------------------------------
def reference_forward(x, params):
    h = x.astype(jnp.float32)
    for layer in params[:-1]:
        w, b, gamma, beta, mean, var = layer
        h = h @ w + b
        if CONFIG["batch_norm"]:
            h = (h - mean) * jax.lax.rsqrt(var + BN_EPS) * gamma + beta
        h = _activation(h, CONFIG["activation"])
    w, b = params[-1]
    return h @ w + b


if __name__ == "__main__":
    key = jax.random.PRNGKey(0)
    key, kx1, kx2 = jax.random.split(key, 3)

    in_dim = sum(CONFIG["views_dims"])
    params = init_params(key)

    # Pack / fold once (cached across all forward calls).
    packed = fold_and_pack_params(params)
    packed = jax.tree_util.tree_map(jax.block_until_ready, packed)

    # Small batch: single tile sized to round_up(batch, 8) -> no wasted rows.
    x_small = jax.random.normal(kx1, (2, in_dim), jnp.float32)
    out_small = jax.block_until_ready(base_network_forward(x_small, packed))
    ref_small = reference_forward(x_small, params)
    assert out_small.shape == (2, CONFIG["output_dim"])
    # bf16 MXU inputs + bf16 output store with f32 accumulation -> bf16-level tolerance.
    assert jnp.allclose(out_small, ref_small, atol=3e-2, rtol=3e-2), "mismatch (small batch)"

    # Larger batch: exercises the multi-step parallel grid (>= 2 tiles for v7x megacore).
    x_big = jax.random.normal(kx2, (600, in_dim), jnp.float32)
    out_big = jax.block_until_ready(base_network_forward(x_big, packed))
    ref_big = reference_forward(x_big, params)
    assert out_big.shape == (600, CONFIG["output_dim"])
    assert jnp.allclose(out_big, ref_big, atol=3e-2, rtol=3e-2), "mismatch (large batch)"

    print("KERNEL_OK")
</pallas_src>

<mosaic_0001>
module attributes {stable_mosaic.version = 11 : i64} {
  func.func @mlp_kernel(%arg0: i32, %arg1: memref<8x16xbf16, #tpu.memory_space<vmem>>, %arg2: memref<16x128xbf16, #tpu.memory_space<vmem>>, %arg3: memref<2x128x128xbf16, #tpu.memory_space<vmem>>, %arg4: memref<3x128xf32, #tpu.memory_space<vmem>>, %arg5: memref<8x128xbf16, #tpu.memory_space<vmem>>) attributes {dimension_semantics = [#tpu.dimension_semantics<parallel>], iteration_bounds = array<i64: 1>, scalar_prefetch = 0 : i64, scratch_operands = 0 : i64, tpu.core_type = #tpu.core_type<tc>, window_params = [{transform_indices = @transform_0, window_bounds = array<i64: 8, 16>}, {pipeline_mode = #tpu.pipeline_mode<synchronous>, transform_indices = @transform_1, window_bounds = array<i64: 16, 128>}, {pipeline_mode = #tpu.pipeline_mode<synchronous>, transform_indices = @transform_2, window_bounds = array<i64: 2, 128, 128>}, {pipeline_mode = #tpu.pipeline_mode<synchronous>, transform_indices = @transform_3, window_bounds = array<i64: 3, 128>}, {transform_indices = @transform_4, window_bounds = array<i64: 8, 128>}]} {
    %c0 = arith.constant 0 : index
    %c0_0 = arith.constant 0 : index
    %0 = vector.load %arg4[%c0, %c0_0] : memref<3x128xf32, #tpu.memory_space<vmem>>, vector<3x128xf32>
    %c0_1 = arith.constant 0 : index
    %c0_2 = arith.constant 0 : index
    %1 = vector.load %arg1[%c0_1, %c0_2] : memref<8x16xbf16, #tpu.memory_space<vmem>>, vector<8x16xbf16>
    %c0_3 = arith.constant 0 : index
    %c0_4 = arith.constant 0 : index
    %2 = vector.load %arg2[%c0_3, %c0_4] : memref<16x128xbf16, #tpu.memory_space<vmem>>, vector<16x128xbf16>
    %cst = arith.constant dense<0.000000e+00> : vector<8x128xf32>
    %3 = tpu.matmul %1, %2, %cst {dimension_numbers = #tpu.dot_dimension_numbers<[1], [0], [0], [1], [0, 0, 1, 1], [], []>} : vector<8x16xbf16>, vector<16x128xbf16>, vector<8x128xf32> -> vector<8x128xf32>
    %4 = vector.extract_strided_slice %0 {offsets = [0, 0], sizes = [1, 128], strides = [1, 1]} : vector<3x128xf32> to vector<1x128xf32>
    %5 = vector.broadcast %4 : vector<1x128xf32> to vector<8x128xf32>
    %6 = arith.addf %3, %5 : vector<8x128xf32>
    %cst_5 = arith.constant 0.000000e+00 : f32
    %7 = vector.broadcast %cst_5 : f32 to vector<8x128xf32>
    %8 = arith.maximumf %6, %7 : vector<8x128xf32>
    %9 = arith.truncf %8 : vector<8x128xf32> to vector<8x128xbf16>
    %c0_6 = arith.constant 0 : index
    %c0_7 = arith.constant 0 : index
    %c0_8 = arith.constant 0 : index
    %10 = vector.load %arg3[%c0_6, %c0_7, %c0_8] : memref<2x128x128xbf16, #tpu.memory_space<vmem>>, vector<1x128x128xbf16>
    %11 = vector.shape_cast %10 : vector<1x128x128xbf16> to vector<128x128xbf16>
    %cst_9 = arith.constant dense<0.000000e+00> : vector<8x128xf32>
    %12 = tpu.matmul %9, %11, %cst_9 {dimension_numbers = #tpu.dot_dimension_numbers<[1], [0], [0], [1], [0, 0, 1, 1], [], []>} : vector<8x128xbf16>, vector<128x128xbf16>, vector<8x128xf32> -> vector<8x128xf32>
    %13 = vector.extract_strided_slice %0 {offsets = [1, 0], sizes = [1, 128], strides = [1, 1]} : vector<3x128xf32> to vector<1x128xf32>
    %14 = vector.broadcast %13 : vector<1x128xf32> to vector<8x128xf32>
    %15 = arith.addf %12, %14 : vector<8x128xf32>
    %cst_10 = arith.constant 0.000000e+00 : f32
    %16 = vector.broadcast %cst_10 : f32 to vector<8x128xf32>
    %17 = arith.maximumf %15, %16 : vector<8x128xf32>
    %18 = arith.truncf %17 : vector<8x128xf32> to vector<8x128xbf16>
    %c1 = arith.constant 1 : index
    %c0_11 = arith.constant 0 : index
    %c0_12 = arith.constant 0 : index
    %19 = vector.load %arg3[%c1, %c0_11, %c0_12] : memref<2x128x128xbf16, #tpu.memory_space<vmem>>, vector<1x128x128xbf16>
    %20 = vector.shape_cast %19 : vector<1x128x128xbf16> to vector<128x128xbf16>
    %cst_13 = arith.constant dense<0.000000e+00> : vector<8x128xf32>
    %21 = tpu.matmul %18, %20, %cst_13 {dimension_numbers = #tpu.dot_dimension_numbers<[1], [0], [0], [1], [0, 0, 1, 1], [], []>} : vector<8x128xbf16>, vector<128x128xbf16>, vector<8x128xf32> -> vector<8x128xf32>
    %22 = vector.extract_strided_slice %0 {offsets = [2, 0], sizes = [1, 128], strides = [1, 1]} : vector<3x128xf32> to vector<1x128xf32>
    %23 = vector.broadcast %22 : vector<1x128xf32> to vector<8x128xf32>
    %24 = arith.addf %21, %23 : vector<8x128xf32>
    %25 = arith.truncf %24 : vector<8x128xf32> to vector<8x128xbf16>
    %c0_14 = arith.constant 0 : index
    %c0_15 = arith.constant 0 : index
    %26 = vector.load %arg5[%c0_14, %c0_15] : memref<8x128xbf16, #tpu.memory_space<vmem>>, vector<8x128xbf16>
    tpu.vector_store %arg5[%c0_14, %c0_15], %25 {strides = array<i32>} : memref<8x128xbf16, #tpu.memory_space<vmem>>, vector<8x128xbf16>,
    return
  }
  func.func @transform_0(%arg0: i32) -> (i32, i32) {
    %c0_i32 = arith.constant 0 : i32
    %c0_i32_0 = arith.constant 0 : i32
    return %arg0, %c0_i32 : i32, i32
  }
  func.func @transform_1(%arg0: i32) -> (i32, i32) {
    %c0_i32 = arith.constant 0 : i32
    %c0_i32_0 = arith.constant 0 : i32
    %c0_i32_1 = arith.constant 0 : i32
    return %c0_i32, %c0_i32_0 : i32, i32
  }
  func.func @transform_2(%arg0: i32) -> (i32, i32, i32) {
    %c0_i32 = arith.constant 0 : i32
    %c0_i32_0 = arith.constant 0 : i32
    %c0_i32_1 = arith.constant 0 : i32
    %c0_i32_2 = arith.constant 0 : i32
    return %c0_i32, %c0_i32_0, %c0_i32_1 : i32, i32, i32
  }
  func.func @transform_3(%arg0: i32) -> (i32, i32) {
    %c0_i32 = arith.constant 0 : i32
    %c0_i32_0 = arith.constant 0 : i32
    %c0_i32_1 = arith.constant 0 : i32
    return %c0_i32, %c0_i32_0 : i32, i32
  }
  func.func @transform_4(%arg0: i32) -> (i32, i32) {
    %c0_i32 = arith.constant 0 : i32
    %c0_i32_0 = arith.constant 0 : i32
    return %arg0, %c0_i32 : i32, i32
  }
}

</mosaic_0001>

<llo_original>
// kernel: mlp_forward.1
$region0: #{mlp_forward.1}
  #allocation0 [shape = 'u32[]', space=smem, size = 0x4, offset = 0x4, fixed_abs, tag = 'smem constant byte address 0x4 - core index']
  #allocation1 [shape = 'u32[144,128]{1,0:T(1,128)}', space=vmem, size = 0x12000, scoped, tag = 'internal scratch']
  %s0 = inlined_call_operand.vmem [shape: bf16[8,16], index: 0, kind: input, shape index: {}]
  %s1 = inlined_call_operand.vmem [shape: bf16[16,128], index: 1, kind: input, shape index: {}]
  %s2 = inlined_call_operand.hbm [shape: bf16[2,128,128], index: 2, kind: input, shape index: {}]
  %s3 = inlined_call_operand.vmem [shape: f32[3,128], index: 3, kind: input, shape index: {}]
  %s4 = inlined_call_operand.hbm [shape: bf16[8,128], index: 4, kind: output, shape index: {}]
  %s5 = sld [smem:[#allocation0]]
  $region30: #{mlp_forward.1} parent=0
    _
  %s7 = ssub.s32 1, %s5
  %s8 = scalar_select 0, %s7, %s5
  $region1: #{mlp_forward.1} parent=0
    #allocation2 [shape = 'u8[65536]{0}', space=vmem, size = 0x10000, scoped, tag = 'input window, operand 2, single buffered']
    #allocation3 [shape = 's32[1]{0}', space=sflag, size = 0x4, scoped, tag = 'scoped memory for mlp_forward.1']
    #allocation4 [shape = 's32[1]{0}', space=sflag, size = 0x4, scoped, tag = 'scoped memory for mlp_forward.1']
    #allocation5 [shape = 'u8[2048]{0}', space=vmem, size = 0x800, scoped, tag = 'output window, operand 0, single buffered']
    %9 = vsyncpa [#allocation3], 0
    %10 = vsyncpa [#allocation4], 0
    // Predicated region
    $region2: #{mlp_forward.1} parent=1 // pred_check
      _
    $region3: #{mlp_forward.1} parent=1 // pred_check_branch
      %12 = sbr.rel (0) target = $region5
    $region4: #{mlp_forward.1} parent=1 // pred_region
      _
    $region5: #{mlp_forward.1} parent=1 // pred_fallthru
      _
    // Predicated region
    $region6: #{mlp_forward.1} parent=1 // pred_check
      _
    $region7: #{mlp_forward.1} parent=1 // pred_check_branch
      %14 = sbr.rel (0) target = $region9
    $region8: #{mlp_forward.1} parent=1 // pred_region
      _
    $region9: #{mlp_forward.1} parent=1 // pred_fallthru
      _
    // Predicated region
    $region10: #{mlp_forward.1} parent=1 // pred_check
      _
    $region11: #{mlp_forward.1} parent=1 // pred_check_branch
      %16 = sbr.rel (0) target = $region13
    $region12: #{mlp_forward.1} parent=1 // pred_region
      %s18 = ssub.s32 2048, 2048
      %19 = vsyncadd [#allocation3], %s18
      %s20 = sshll.u32 [#allocation2], 4
      %s21 = int_to_ptr.vmem [resolvable:$true] %s20
      %26 = dma.hbm_to_vmem [thread:$0]  %s2, 2048, %s21, [#allocation3], 64, 64, 4
    $region13: #{mlp_forward.1} parent=1 // pred_fallthru
      _
    // Predicated region
    $region14: #{mlp_forward.1} parent=1 // pred_check
      _
    $region15: #{mlp_forward.1} parent=1 // pred_check_branch
      %28 = sbr.rel (0) target = $region17
    $region16: #{mlp_forward.1} parent=1 // pred_region
      _
    $region17: #{mlp_forward.1} parent=1 // pred_fallthru
      _
    // Predicated region
    $region18: #{mlp_forward.1} parent=1 // pred_check
      _
    $region19: #{mlp_forward.1} parent=1 // pred_check_branch
      %30 = sbr.rel (0) target = $region21
    $region20: #{mlp_forward.1} parent=1 // pred_region
      %31 = dma.done [#allocation3], 2048
    $region21: #{mlp_forward.1} parent=1 // pred_fallthru
      _
    %v33 = vld [vmem:[%s3] sm:$0x7]
    %v34 = vld [vmem:[%s0] sm:$0xf]
    %v35 = vld [vmem:[%s1] sm:$0xf]
    %v36 = vld [vmem:[%s1 + $0x4] sm:$0xf]
    %v37 = vlaneseq
    %v38 = vshrl.u32 %v37, 7
    %v39 = vsub.s32 0, %v38
    %v40 = vrot.slane %v33, %v39
    %v43 = vunpack.c.l.b16 %v35
    %v44 = vunpack.c.l.b16 %v36
    %v45 = vpack.c.b16 %v44, %v43
    %vm47 = vcmask 130048
    %v49 = vsel %vm47, %v34, 0
    %51 = vmatprep.subr.bf16.mxu0 0
    %52 = vmatpush1.bf16.msra.mxu0 0
    %53 = vmatprep.subr.bf16.mxu0 0
    %54 = vmatpush1.bf16.msra.mxu0 0
    %55 = vmatprep.subr.bf16.mxu0 0
    %56 = vmatpush1.bf16.msra.mxu0 0
    %57 = vmatprep.subr.bf16.mxu0 0
    %58 = vmatpush1.bf16.msra.mxu0 0
    %59 = vmatprep.subr.bf16.mxu0 0
    %60 = vmatpush1.bf16.msra.mxu0 0
    %61 = vmatprep.subr.bf16.mxu0 0
    %62 = vmatpush1.bf16.msra.mxu0 0
    %63 = vmatprep.subr.bf16.mxu0 0
    %64 = vmatpush1.bf16.msra.mxu0 0
    %65 = vmatprep.subr.bf16.mxu0 0
    %66 = vmatpush1.bf16.msra.mxu0 %v45
    %67 = vmatprep.subr.bf16.mxu0 0
    %68 = vmatpush2.bf16.msra.mxu0 0
    %69 = vmatprep.subr.bf16.mxu0 0
    %70 = vmatpush2.bf16.msra.mxu0 0
    %71 = vmatprep.subr.bf16.mxu0 0
    %72 = vmatpush2.bf16.msra.mxu0 0
    %73 = vmatprep.subr.bf16.mxu0 0
    %74 = vmatpush2.bf16.msra.mxu0 0
    %75 = vmatprep.subr.bf16.mxu0 0
    %76 = vmatpush2.bf16.msra.mxu0 0
    %77 = vmatprep.subr.bf16.mxu0 0
    %78 = vmatpush2.bf16.msra.mxu0 0
    %79 = vmatprep.subr.bf16.mxu0 0
    %80 = vmatpush2.bf16.msra.mxu0 0
    %81 = vmatprep.subr.bf16.mxu0 0
    %82 = vmatpush2.bf16.msra.mxu0 0
    %83 = vmatprep.mubr.bf16.mxu0 0
    %84 = vmatmul.mubr.bf16.gmra.mxu0 %v49
    %v85 = vpop.f32.mrf.mxu0
    %v86 = vadd.f32 %v40, %v85
    %v87 = vpop.f32.mrf.mxu0
    %v88 = vpop.f32.mrf.mxu0
    %v89 = vpop.f32.mrf.mxu0
    %90 = vdwg.mxu0
    %v91 = vmax.f32 %v86, 0.0
    %v92 = vpack.c.bf16 %v91, %v91
    %v93 = vld [vmem:[#allocation2] sm:$0xf]
    %v94 = vld [vmem:[#allocation2 + $0x4] sm:$0xf]
    %v95 = vld [vmem:[#allocation2 + $0x8] sm:$0xf]
    %v96 = vld [vmem:[#allocation2 + $0xc] sm:$0xf]
    %v97 = vld [vmem:[#allocation2 + $0x10] sm:$0xf]
    %v98 = vld [vmem:[#allocation2 + $0x14] sm:$0xf]
    %v99 = vld [vmem:[#allocation2 + $0x18] sm:$0xf]
    %v100 = vld [vmem:[#allocation2 + $0x1c] sm:$0xf]
    %v101 = vld [vmem:[#allocation2 + $0x20] sm:$0xf]
    %v102 = vld [vmem:[#allocation2 + $0x24] sm:$0xf]
    %v103 = vld [vmem:[#allocation2 + $0x28] sm:$0xf]
    %v104 = vld [vmem:[#allocation2 + $0x2c] sm:$0xf]
    %v105 = vld [vmem:[#allocation2 + $0x30] sm:$0xf]
    %v106 = vld [vmem:[#allocation2 + $0x34] sm:$0xf]
    %v107 = vld [vmem:[#allocation2 + $0x38] sm:$0xf]
    %v108 = vld [vmem:[#allocation2 + $0x3c] sm:$0xf]
    %v109 = vlaneseq
    %v110 = vshrl.u32 %v109, 7
    %v111 = vsub.s32 1, %v110
    %v112 = vrot.slane %v33, %v111
    %v129 = vunpack.c.l.b16 %v93
    %v130 = vunpack.c.l.b16 %v94
    %v131 = vunpack.c.l.b16 %v95
    %v132 = vunpack.c.l.b16 %v96
    %v133 = vunpack.c.l.b16 %v97
    %v134 = vunpack.c.l.b16 %v98
    %v135 = vunpack.c.l.b16 %v99
    %v136 = vunpack.c.l.b16 %v100
    %v137 = vunpack.c.l.b16 %v101
    %v138 = vunpack.c.l.b16 %v102
    %v139 = vunpack.c.l.b16 %v103
    %v140 = vunpack.c.l.b16 %v104
    %v141 = vunpack.c.l.b16 %v105
    %v142 = vunpack.c.l.b16 %v106
    %v143 = vunpack.c.l.b16 %v107
    %v144 = vunpack.c.l.b16 %v108
    %v145 = vpack.c.b16 %v130, %v129
    %v146 = vpack.c.b16 %v132, %v131
    %v147 = vpack.c.b16 %v134, %v133
    %v148 = vpack.c.b16 %v136, %v135
    %v149 = vpack.c.b16 %v138, %v137
    %v150 = vpack.c.b16 %v140, %v139
    %v151 = vpack.c.b16 %v142, %v141
    %v152 = vpack.c.b16 %v144, %v143
    %161 = vmatprep.subr.bf16.mxu0 0
    %162 = vmatpush1.bf16.msra.mxu0 %v152
    %163 = vmatprep.subr.bf16.mxu0 0
    %164 = vmatpush1.bf16.msra.mxu0 %v151
    %165 = vmatprep.subr.bf16.mxu0 0
    %166 = vmatpush1.bf16.msra.mxu0 %v150
    %167 = vmatprep.subr.bf16.mxu0 0
    %168 = vmatpush1.bf16.msra.mxu0 %v149
    %169 = vmatprep.subr.bf16.mxu0 0
    %170 = vmatpush1.bf16.msra.mxu0 %v148
    %171 = vmatprep.subr.bf16.mxu0 0
    %172 = vmatpush1.bf16.msra.mxu0 %v147
    %173 = vmatprep.subr.bf16.mxu0 0
    %174 = vmatpush1.bf16.msra.mxu0 %v146
    %175 = vmatprep.subr.bf16.mxu0 0
    %176 = vmatpush1.bf16.msra.mxu0 %v145
    %177 = vmatprep.subr.bf16.mxu0 0
    %178 = vmatpush2.bf16.msra.mxu0 0
    %179 = vmatprep.subr.bf16.mxu0 0
    %180 = vmatpush2.bf16.msra.mxu0 0
    %181 = vmatprep.subr.bf16.mxu0 0
    %182 = vmatpush2.bf16.msra.mxu0 0
    %183 = vmatprep.subr.bf16.mxu0 0
    %184 = vmatpush2.bf16.msra.mxu0 0
    %185 = vmatprep.subr.bf16.mxu0 0
    %186 = vmatpush2.bf16.msra.mxu0 0
    %187 = vmatprep.subr.bf16.mxu0 0
    %188 = vmatpush2.bf16.msra.mxu0 0
    %189 = vmatprep.subr.bf16.mxu0 0
    %190 = vmatpush2.bf16.msra.mxu0 0
    %191 = vmatprep.subr.bf16.mxu0 0
    %192 = vmatpush2.bf16.msra.mxu0 0
    %193 = vmatprep.mubr.bf16.mxu0 0
    %194 = vmatmul.mubr.bf16.gmra.mxu0 %v92
    %v195 = vpop.f32.mrf.mxu0
    %v196 = vadd.f32 %v112, %v195
    %v197 = vpop.f32.mrf.mxu0
    %v198 = vpop.f32.mrf.mxu0
    %v199 = vpop.f32.mrf.mxu0
    %200 = vdwg.mxu0
    %v201 = vmax.f32 %v196, 0.0
    %v202 = vpack.c.bf16 %v201, %v201
    %s203 = scalar_lea.vmem [#allocation2], 64
    %v204 = vld [vmem:[%s203] sm:$0xf]
    %v205 = vld [vmem:[%s203 + $0x4] sm:$0xf]
    %v206 = vld [vmem:[%s203 + $0x8] sm:$0xf]
    %v207 = vld [vmem:[%s203 + $0xc] sm:$0xf]
    %v208 = vld [vmem:[%s203 + $0x10] sm:$0xf]
    %v209 = vld [vmem:[%s203 + $0x14] sm:$0xf]
    %v210 = vld [vmem:[%s203 + $0x18] sm:$0xf]
    %v211 = vld [vmem:[%s203 + $0x1c] sm:$0xf]
    %v212 = vld [vmem:[%s203 + $0x20] sm:$0xf]
    %v213 = vld [vmem:[%s203 + $0x24] sm:$0xf]
    %v214 = vld [vmem:[%s203 + $0x28] sm:$0xf]
    %v215 = vld [vmem:[%s203 + $0x2c] sm:$0xf]
    %v216 = vld [vmem:[%s203 + $0x30] sm:$0xf]
    %v217 = vld [vmem:[%s203 + $0x34] sm:$0xf]
    %v218 = vld [vmem:[%s203 + $0x38] sm:$0xf]
    %v219 = vld [vmem:[%s203 + $0x3c] sm:$0xf]
    %v220 = vlaneseq
    %v221 = vshrl.u32 %v220, 7
    %v222 = vsub.s32 2, %v221
    %v223 = vrot.slane %v33, %v222
    %v240 = vunpack.c.l.b16 %v204
    %v241 = vunpack.c.l.b16 %v205
    %v242 = vunpack.c.l.b16 %v206
    %v243 = vunpack.c.l.b16 %v207
    %v244 = vunpack.c.l.b16 %v208
    %v245 = vunpack.c.l.b16 %v209
    %v246 = vunpack.c.l.b16 %v210
    %v247 = vunpack.c.l.b16 %v211
    %v248 = vunpack.c.l.b16 %v212
    %v249 = vunpack.c.l.b16 %v213
    %v250 = vunpack.c.l.b16 %v214
    %v251 = vunpack.c.l.b16 %v215
    %v252 = vunpack.c.l.b16 %v216
    %v253 = vunpack.c.l.b16 %v217
    %v254 = vunpack.c.l.b16 %v218
    %v255 = vunpack.c.l.b16 %v219
    %v256 = vpack.c.b16 %v241, %v240
    %v257 = vpack.c.b16 %v243, %v242
    %v258 = vpack.c.b16 %v245, %v244
    %v259 = vpack.c.b16 %v247, %v246
    %v260 = vpack.c.b16 %v249, %v248
    %v261 = vpack.c.b16 %v251, %v250
    %v262 = vpack.c.b16 %v253, %v252
    %v263 = vpack.c.b16 %v255, %v254
    %272 = vmatprep.subr.bf16.mxu0 0
    %273 = vmatpush1.bf16.msra.mxu0 %v263
    %274 = vmatprep.subr.bf16.mxu0 0
    %275 = vmatpush1.bf16.msra.mxu0 %v262
    %276 = vmatprep.subr.bf16.mxu0 0
    %277 = vmatpush1.bf16.msra.mxu0 %v261
    %278 = vmatprep.subr.bf16.mxu0 0
    %279 = vmatpush1.bf16.msra.mxu0 %v260
    %280 = vmatprep.subr.bf16.mxu0 0
    %281 = vmatpush1.bf16.msra.mxu0 %v259
    %282 = vmatprep.subr.bf16.mxu0 0
    %283 = vmatpush1.bf16.msra.mxu0 %v258
    %284 = vmatprep.subr.bf16.mxu0 0
    %285 = vmatpush1.bf16.msra.mxu0 %v257
    %286 = vmatprep.subr.bf16.mxu0 0
    %287 = vmatpush1.bf16.msra.mxu0 %v256
    %288 = vmatprep.subr.bf16.mxu0 0
    %289 = vmatpush2.bf16.msra.mxu0 0
    %290 = vmatprep.subr.bf16.mxu0 0
    %291 = vmatpush2.bf16.msra.mxu0 0
    %292 = vmatprep.subr.bf16.mxu0 0
    %293 = vmatpush2.bf16.msra.mxu0 0
    %294 = vmatprep.subr.bf16.mxu0 0
    %295 = vmatpush2.bf16.msra.mxu0 0
    %296 = vmatprep.subr.bf16.mxu0 0
    %297 = vmatpush2.bf16.msra.mxu0 0
    %298 = vmatprep.subr.bf16.mxu0 0
    %299 = vmatpush2.bf16.msra.mxu0 0
    %300 = vmatprep.subr.bf16.mxu0 0
    %301 = vmatpush2.bf16.msra.mxu0 0
    %302 = vmatprep.subr.bf16.mxu0 0
    %303 = vmatpush2.bf16.msra.mxu0 0
    %304 = vmatprep.mubr.bf16.mxu0 0
    %305 = vmatmul.mubr.bf16.gmra.mxu0 %v202
    %v306 = vpop.f32.mrf.mxu0
    %v307 = vadd.f32 %v223, %v306
    %v308 = vpop.f32.mrf.mxu0
    %v309 = vpop.f32.mrf.mxu0
    %v310 = vpop.f32.mrf.mxu0
    %311 = vdwg.mxu0
    %v312 = vpack.c.bf16 %v307, %v307
    %313 = vst [vmem:[#allocation5] sm:$0xf] %v312
    // Predicated region
    $region22: #{mlp_forward.1} parent=1 // pred_check
      _
    $region23: #{mlp_forward.1} parent=1 // pred_check_branch
      %315 = sbr.rel (0) target = $region25
    $region24: #{mlp_forward.1} parent=1 // pred_region
      %s317 = ssub.s32 64, 64
      %318 = vsyncadd [#allocation4], %s317
      %s320 = sshll.u32 [#allocation5], 4
      %s321 = int_to_ptr.vmem [resolvable:$true] %s320
      %323 = dma.vmem_to_hbm [thread:$0]  %s321, 64, %s4, [#allocation4]
    $region25: #{mlp_forward.1} parent=1 // pred_fallthru
      _
    // Predicated region
    $region26: #{mlp_forward.1} parent=1 // pred_check
      _
    $region27: #{mlp_forward.1} parent=1 // pred_check_branch
      %325 = sbr.rel (0) target = $region29
    $region28: #{mlp_forward.1} parent=1 // pred_region
      %326 = dma.done [#allocation4], 64
    $region29: #{mlp_forward.1} parent=1 // pred_fallthru
      _
    %327 = vsyncpa [#allocation3], 1
    %328 = vsyncpa [#allocation4], 1

</llo_original>
